<compile_context>
chip_gen: v7x
topology: tpu7x:2x2x1
jax: 0.10.0
libtpu: 0.0.40
codegen_flags: <defaults>
</compile_context>

<pallas_src>
import functools

import jax
import jax.numpy as jnp
from jax.experimental import pallas as pl
from jax.experimental.pallas import tpu as pltpu

BN_EPS = 1e-5


def _round_up(x, m):
    return (x + m - 1) // m * m


def make_mlp_kernel(ncats, compute_dtype):
    """Fused MLP kernel. `ncats` = per-embedding-table category counts (static).

    Ref order: num, ids, w1_num, w1_cat, b1, w2, b2, w3, b3, wo, bo, out.
    """
    offsets = []
    off = 0
    for n in ncats:
        offsets.append(off)
        off += n
    n_cat_total = off

    def kernel(num_ref, ids_ref, w1n_ref, w1c_ref, b1_ref, w2_ref, b2_ref,
               w3_ref, b3_ref, wo_ref, bo_ref, out_ref):
        tile_b = num_ref.shape[0]

        # In-kernel cast (VPU) — avoids a separate host-side f32->bf16 pass.
        num = num_ref[...].astype(compute_dtype)                 # (tile_b, nnum)

        # ---- fc1 (+BN folded), numerical part on the MXU ----
        h = jnp.dot(num, w1n_ref[...], preferred_element_type=jnp.float32)

        # ---- fc1 categorical part: single combined one-hot over all tables ----
        # Tables occupy disjoint lane ranges [off_j, off_j+ncat_j); ids are
        # clamped (matches jnp.take / guards OOV) so ranges never collide.
        if n_cat_total > 0:
            ids = ids_ref[...]                                   # (tile_b, n_emb) int32
            lane = jax.lax.broadcasted_iota(jnp.int32, (tile_b, n_cat_total), 1)
            hit = None
            for j, (ncat, off_j) in enumerate(zip(ncats, offsets)):
                idj = jnp.clip(ids[:, j:j + 1], 0, ncat - 1) + off_j
                cmp = lane == idj
                hit = cmp if hit is None else (hit | cmp)
            onehot = hit.astype(w1c_ref.dtype)                   # exact 0/1, f32
            h = h + jnp.dot(onehot, w1c_ref[...],
                            preferred_element_type=jnp.float32)

        h = jnp.maximum(h + b1_ref[...], 0.0)                    # bias + ReLU, f32

        # ---- fc2 (+BN folded) + ReLU (dropout = identity in eval) ----
        h = jnp.dot(h.astype(w2_ref.dtype), w2_ref[...],
                    preferred_element_type=jnp.float32) + b2_ref[...]
        h = jnp.maximum(h, 0.0)

        # ---- fc3 (+BN folded) + ReLU ----
        h = jnp.dot(h.astype(w3_ref.dtype), w3_ref[...],
                    preferred_element_type=jnp.float32) + b3_ref[...]
        h = jnp.maximum(h, 0.0)

        # ---- head 64 -> 1 as a VPU reduction, stored lane-dense as (1, tile_b).
        # The sublane->lane relayout of the per-row sums rides the XLU slot.
        row = jnp.sum(h * wo_ref[...], axis=-1)                  # (tile_b,)
        out_ref[...] = row[None, :] + bo_ref[...]                # (1, tile_b)

    return kernel


def fold_params(params, compute_dtype=jnp.bfloat16):
    """Fold eval-mode BatchNorm into the Linears; pre-multiply embeddings by W1."""

    def bn_fold(layer):
        scale = layer["gamma"] / jnp.sqrt(layer["var"] + BN_EPS)
        w = layer["w"] * scale[None, :]
        b = (layer["b"] - layer["mean"]) * scale + layer["beta"]
        return w, b

    w1, b1 = bn_fold(params["l1"])
    w2, b2 = bn_fold(params["l2"])
    w3, b3 = bn_fold(params["l3"])

    # fc1 rows are ordered [emb_0, emb_1, ..., numerical] (torch.cat order).
    g_tables = []
    off = 0
    for _, table in params["embeddings"].items():
        dim = table.shape[1]
        g_tables.append(table @ w1[off:off + dim, :])            # keep f32 (exact-ish)
        off += dim
    w1_num = w1[off:, :].astype(compute_dtype)
    w1_cat = (jnp.concatenate(g_tables, axis=0) if g_tables
              else jnp.zeros((0, w1.shape[1]), jnp.float32)).astype(jnp.float32)

    return {
        "w1_num": w1_num,
        "w1_cat": w1_cat,
        "b1": b1[None, :].astype(jnp.float32),
        "w2": w2.astype(compute_dtype),
        "b2": b2[None, :].astype(jnp.float32),
        "w3": w3.astype(compute_dtype),
        "b3": b3[None, :].astype(jnp.float32),
        "wo": params["out"]["w"].T.astype(jnp.float32),          # (1, 64)
        "bo": params["out"]["b"][None, :].astype(jnp.float32),   # (1, 1)
    }


def _vmem_limit_bytes(tile_b, nnum, n_emb, n_cat_total):
    # Rough upper bound on per-tile VMEM: streamed inputs (double-buffered),
    # f32/bf16 intermediates of the three hidden layers, combined one-hot.
    est = tile_b * (4 * max(n_cat_total, 1) + 6 * (256 + 128 + 64)
                    + 8 * nnum + 8 * max(n_emb, 1)) + (2 << 20)
    # >= 32 MiB (v5e default is only 16 MiB), <= 64 MiB (v7x physical VMEM).
    return int(min(64 * 1024 * 1024, max(32 * 1024 * 1024, 2 * est)))


def new_user_predictor_forward(numerical_feats, categorical_feats_dict, params,
                               *, block_b=4096, compute_dtype=jnp.bfloat16):
    """Fused forward pass (eval mode): embeddings + 3x(Linear+BN+ReLU) + head."""
    folded = fold_params(params, compute_dtype)
    # NOTE: like the torch module's fc1, this assumes every embedding column is
    # present in categorical_feats_dict (otherwise fc1's input dim would not match).
    emb_cols = list(params["embeddings"].keys())
    n_emb = len(emb_cols)
    ncats = tuple(int(params["embeddings"][c].shape[0]) for c in emb_cols)
    n_cat_total = sum(ncats)

    B, nnum = numerical_feats.shape
    b16 = _round_up(B, 16)
    tile_b = min(block_b, b16)
    # v7x: if one tile would hold the whole (large) batch, split into >=2 tiles
    # so dimension_semantics=("parallel",) can use both TensorCores.
    if tile_b == b16 and b16 >= 2048:
        tile_b = _round_up(-(-b16 // 2), 16)
    b_pad = _round_up(B, tile_b)
    n_tiles = b_pad // tile_b
    pad = b_pad - B

    num = numerical_feats.astype(jnp.float32)                    # cast to bf16 in-kernel
    ids = (jnp.stack([categorical_feats_dict[c].astype(jnp.int32)
                      for c in emb_cols], axis=1)
           if n_emb else jnp.zeros((B, 1), jnp.int32))
    if pad:
        # Padded rows get zeros / id 0; harmless, the output is sliced to [:B].
        num = jnp.pad(num, ((0, pad), (0, 0)))
        ids = jnp.pad(ids, ((0, pad), (0, 0)))

    def resident(arr):
        return pl.BlockSpec(arr.shape, lambda i: (0, 0))

    out = pl.pallas_call(
        make_mlp_kernel(ncats, compute_dtype),
        out_shape=jax.ShapeDtypeStruct((n_tiles, tile_b), jnp.float32),
        grid=(n_tiles,),
        in_specs=[
            pl.BlockSpec((tile_b, nnum), lambda i: (i, 0)),
            pl.BlockSpec((tile_b, ids.shape[1]), lambda i: (i, 0)),
            resident(folded["w1_num"]), resident(folded["w1_cat"]),
            resident(folded["b1"]), resident(folded["w2"]), resident(folded["b2"]),
            resident(folded["w3"]), resident(folded["b3"]),
            resident(folded["wo"]), resident(folded["bo"]),
        ],
        out_specs=pl.BlockSpec((1, tile_b), lambda i: (i, 0)),
        compiler_params=pltpu.CompilerParams(
            dimension_semantics=("parallel",),
            vmem_limit_bytes=_vmem_limit_bytes(tile_b, nnum, n_emb, n_cat_total)),
    )(num, ids, folded["w1_num"], folded["w1_cat"], folded["b1"],
      folded["w2"], folded["b2"], folded["w3"], folded["b3"],
      folded["wo"], folded["bo"])

    return out.reshape(-1)[:B][:, None]


def _reference_forward(numerical_feats, categorical_feats_dict, params):
    """Pure-JAX f32 reference matching the PyTorch module in eval mode."""
    embedded = [jnp.take(t, categorical_feats_dict[c], axis=0)
                for c, t in params["embeddings"].items()
                if c in categorical_feats_dict]
    x = (jnp.concatenate(embedded + [numerical_feats], axis=1)
         if embedded else numerical_feats)
    for name in ("l1", "l2", "l3"):
        p = params[name]
        h = x @ p["w"] + p["b"]
        h = (h - p["mean"]) / jnp.sqrt(p["var"] + BN_EPS) * p["gamma"] + p["beta"]
        x = jnp.maximum(h, 0.0)
    return x @ params["out"]["w"] + params["out"]["b"]


def init_params(key, num_numerical_features, embedding_dims):
    """Deterministic parameter init mirroring the nn.Module shapes."""
    params = {"embeddings": {}}
    embed_out = 0
    keys = jax.random.split(key, 16)
    ki = 0
    for col, (num_categories, embed_dim) in embedding_dims.items():
        params["embeddings"][col] = (
            jax.random.normal(keys[ki], (num_categories, embed_dim), jnp.float32) * 0.1
        )
        ki += 1
        embed_out += embed_dim

    total_in = num_numerical_features + embed_out

    def linear(k, din, dout):
        scale = 1.0 / jnp.sqrt(din)
        return {
            "w": jax.random.uniform(k, (din, dout), jnp.float32, -scale, scale),
            "b": jnp.zeros((dout,), jnp.float32),
        }

    for name, (din, dout) in zip(
            ("l1", "l2", "l3"), [(total_in, 256), (256, 128), (128, 64)]):
        lin = linear(keys[ki], din, dout)
        ki += 1
        # BatchNorm (eval): gamma=1, beta=0, running_mean=0, running_var=1.
        lin.update(
            gamma=jnp.ones((dout,), jnp.float32),
            beta=jnp.zeros((dout,), jnp.float32),
            mean=jnp.zeros((dout,), jnp.float32),
            var=jnp.ones((dout,), jnp.float32),
        )
        params[name] = lin

    params["out"] = linear(keys[ki], 64, 1)
    return params, total_in


if __name__ == "__main__":
    key = jax.random.PRNGKey(0)
    k_param, k_num, k_c1, k_c2 = jax.random.split(key, 4)

    batch = 8
    num_numerical_features = 8
    embedding_dims = {"country": (10, 4), "device_type": (5, 4)}

    params, total_in = init_params(k_param, num_numerical_features, embedding_dims)

    numerical_feats = jax.random.normal(
        k_num, (batch, num_numerical_features), jnp.float32)
    categorical_feats_dict = {
        "country": jax.random.randint(k_c1, (batch,), 0, 10),
        "device_type": jax.random.randint(k_c2, (batch,), 0, 5),
    }

    fwd = functools.partial(new_user_predictor_forward, params=params)
    out = fwd(numerical_feats, categorical_feats_dict)
    out = jax.block_until_ready(out)
    assert out.shape == (batch, 1), out.shape

    ref = _reference_forward(numerical_feats, categorical_feats_dict, params)
    assert jnp.allclose(out, ref, atol=2e-2, rtol=2e-2), (out, ref)
    print("KERNEL_OK")
</pallas_src>

<mosaic_0001>
module attributes {stable_mosaic.version = 11 : i64} {
  func.func @kernel(%arg0: i32, %arg1: memref<16x8xf32, #tpu.memory_space<vmem>>, %arg2: memref<16x2xi32, #tpu.memory_space<vmem>>, %arg3: memref<8x256xbf16, #tpu.memory_space<vmem>>, %arg4: memref<15x256xf32, #tpu.memory_space<vmem>>, %arg5: memref<1x256xf32, #tpu.memory_space<vmem>>, %arg6: memref<256x128xbf16, #tpu.memory_space<vmem>>, %arg7: memref<1x128xf32, #tpu.memory_space<vmem>>, %arg8: memref<128x64xbf16, #tpu.memory_space<vmem>>, %arg9: memref<1x64xf32, #tpu.memory_space<vmem>>, %arg10: memref<1x64xf32, #tpu.memory_space<vmem>>, %arg11: memref<1x1xf32, #tpu.memory_space<vmem>>, %arg12: memref<1x16xf32, #tpu.memory_space<vmem>>) attributes {dimension_semantics = [#tpu.dimension_semantics<parallel>], iteration_bounds = array<i64: 1>, scalar_prefetch = 0 : i64, scratch_operands = 0 : i64, tpu.core_type = #tpu.core_type<tc>, window_params = [{transform_indices = @transform_0, window_bounds = array<i64: 16, 8>}, {transform_indices = @transform_1, window_bounds = array<i64: 16, 2>}, {pipeline_mode = #tpu.pipeline_mode<synchronous>, transform_indices = @transform_2, window_bounds = array<i64: 8, 256>}, {pipeline_mode = #tpu.pipeline_mode<synchronous>, transform_indices = @transform_3, window_bounds = array<i64: 15, 256>}, {pipeline_mode = #tpu.pipeline_mode<synchronous>, transform_indices = @transform_4, window_bounds = array<i64: 1, 256>}, {pipeline_mode = #tpu.pipeline_mode<synchronous>, transform_indices = @transform_5, window_bounds = array<i64: 256, 128>}, {pipeline_mode = #tpu.pipeline_mode<synchronous>, transform_indices = @transform_6, window_bounds = array<i64: 1, 128>}, {pipeline_mode = #tpu.pipeline_mode<synchronous>, transform_indices = @transform_7, window_bounds = array<i64: 128, 64>}, {pipeline_mode = #tpu.pipeline_mode<synchronous>, transform_indices = @transform_8, window_bounds = array<i64: 1, 64>}, {pipeline_mode = #tpu.pipeline_mode<synchronous>, transform_indices = @transform_9, window_bounds = array<i64: 1, 64>}, {pipeline_mode = #tpu.pipeline_mode<synchronous>, transform_indices = @transform_10, window_bounds = array<i64: 1, 1>}, {transform_indices = @transform_11, window_bounds = array<i64: 1, 16>}]} {
    %c0 = arith.constant 0 : index
    %c0_0 = arith.constant 0 : index
    %0 = vector.load %arg1[%c0, %c0_0] : memref<16x8xf32, #tpu.memory_space<vmem>>, vector<16x8xf32>
    %1 = arith.truncf %0 : vector<16x8xf32> to vector<16x8xbf16>
    %c0_1 = arith.constant 0 : index
    %c0_2 = arith.constant 0 : index
    %2 = vector.load %arg3[%c0_1, %c0_2] : memref<8x256xbf16, #tpu.memory_space<vmem>>, vector<8x256xbf16>
    %cst = arith.constant dense<0.000000e+00> : vector<16x256xf32>
    %3 = tpu.matmul %1, %2, %cst {dimension_numbers = #tpu.dot_dimension_numbers<[1], [0], [0], [1], [0, 0, 1, 1], [], []>} : vector<16x8xbf16>, vector<8x256xbf16>, vector<16x256xf32> -> vector<16x256xf32>
    %c0_3 = arith.constant 0 : index
    %c0_4 = arith.constant 0 : index
    %4 = vector.load %arg2[%c0_3, %c0_4] : memref<16x2xi32, #tpu.memory_space<vmem>>, vector<16x2xi32>
    %5 = tpu.iota {dimensions = array<i32: 1>} : vector<16x15xi32>
    %6 = vector.extract_strided_slice %4 {offsets = [0, 0], sizes = [16, 1], strides = [1, 1]} : vector<16x2xi32> to vector<16x1xi32>
    %c0_i32 = arith.constant 0 : i32
    %c9_i32 = arith.constant 9 : i32
    %7 = vector.broadcast %c0_i32 : i32 to vector<16x1xi32>
    %8 = arith.maxsi %7, %6 : vector<16x1xi32>
    %9 = vector.broadcast %c9_i32 : i32 to vector<16x1xi32>
    %10 = arith.minsi %9, %8 : vector<16x1xi32>
    %c0_i32_5 = arith.constant 0 : i32
    %11 = vector.broadcast %c0_i32_5 : i32 to vector<16x1xi32>
    %12 = arith.addi %10, %11 : vector<16x1xi32>
    %13 = vector.broadcast %12 : vector<16x1xi32> to vector<16x15xi32>
    %14 = arith.cmpi eq, %5, %13 : vector<16x15xi32>
    %15 = vector.extract_strided_slice %4 {offsets = [0, 1], sizes = [16, 1], strides = [1, 1]} : vector<16x2xi32> to vector<16x1xi32>
    %c0_i32_6 = arith.constant 0 : i32
    %c4_i32 = arith.constant 4 : i32
    %16 = vector.broadcast %c0_i32_6 : i32 to vector<16x1xi32>
    %17 = arith.maxsi %16, %15 : vector<16x1xi32>
    %18 = vector.broadcast %c4_i32 : i32 to vector<16x1xi32>
    %19 = arith.minsi %18, %17 : vector<16x1xi32>
    %c10_i32 = arith.constant 10 : i32
    %20 = vector.broadcast %c10_i32 : i32 to vector<16x1xi32>
    %21 = arith.addi %19, %20 : vector<16x1xi32>
    %22 = vector.broadcast %21 : vector<16x1xi32> to vector<16x15xi32>
    %23 = arith.cmpi eq, %5, %22 : vector<16x15xi32>
    %24 = arith.ori %14, %23 : vector<16x15xi1>
    %25 = arith.extui %24 : vector<16x15xi1> to vector<16x15xi32>
    %26 = arith.sitofp %25 : vector<16x15xi32> to vector<16x15xf32>
    %c0_7 = arith.constant 0 : index
    %c0_8 = arith.constant 0 : index
    %27 = vector.load %arg4[%c0_7, %c0_8] : memref<15x256xf32, #tpu.memory_space<vmem>>, vector<15x256xf32>
    %cst_9 = arith.constant dense<0.000000e+00> : vector<16x256xf32>
    %28 = tpu.matmul %26, %27, %cst_9 {dimension_numbers = #tpu.dot_dimension_numbers<[1], [0], [0], [1], [0, 0, 1, 1], [], []>} : vector<16x15xf32>, vector<15x256xf32>, vector<16x256xf32> -> vector<16x256xf32>
    %29 = arith.addf %3, %28 : vector<16x256xf32>
    %c0_10 = arith.constant 0 : index
    %c0_11 = arith.constant 0 : index
    %30 = vector.load %arg5[%c0_10, %c0_11] : memref<1x256xf32, #tpu.memory_space<vmem>>, vector<1x256xf32>
    %31 = vector.broadcast %30 : vector<1x256xf32> to vector<16x256xf32>
    %32 = arith.addf %29, %31 : vector<16x256xf32>
    %cst_12 = arith.constant 0.000000e+00 : f32
    %33 = vector.broadcast %cst_12 : f32 to vector<16x256xf32>
    %34 = arith.maximumf %32, %33 : vector<16x256xf32>
    %35 = arith.truncf %34 : vector<16x256xf32> to vector<16x256xbf16>
    %c0_13 = arith.constant 0 : index
    %c0_14 = arith.constant 0 : index
    %36 = vector.load %arg6[%c0_13, %c0_14] : memref<256x128xbf16, #tpu.memory_space<vmem>>, vector<256x128xbf16>
    %cst_15 = arith.constant dense<0.000000e+00> : vector<16x128xf32>
    %37 = tpu.matmul %35, %36, %cst_15 {dimension_numbers = #tpu.dot_dimension_numbers<[1], [0], [0], [1], [0, 0, 1, 1], [], []>} : vector<16x256xbf16>, vector<256x128xbf16>, vector<16x128xf32> -> vector<16x128xf32>
    %c0_16 = arith.constant 0 : index
    %c0_17 = arith.constant 0 : index
    %38 = vector.load %arg7[%c0_16, %c0_17] : memref<1x128xf32, #tpu.memory_space<vmem>>, vector<1x128xf32>
    %39 = vector.broadcast %38 : vector<1x128xf32> to vector<16x128xf32>
    %40 = arith.addf %37, %39 : vector<16x128xf32>
    %cst_18 = arith.constant 0.000000e+00 : f32
    %41 = vector.broadcast %cst_18 : f32 to vector<16x128xf32>
    %42 = arith.maximumf %40, %41 : vector<16x128xf32>
    %43 = arith.truncf %42 : vector<16x128xf32> to vector<16x128xbf16>
    %c0_19 = arith.constant 0 : index
    %c0_20 = arith.constant 0 : index
    %44 = vector.load %arg8[%c0_19, %c0_20] : memref<128x64xbf16, #tpu.memory_space<vmem>>, vector<128x64xbf16>
    %cst_21 = arith.constant dense<0.000000e+00> : vector<16x64xf32>
    %45 = tpu.matmul %43, %44, %cst_21 {dimension_numbers = #tpu.dot_dimension_numbers<[1], [0], [0], [1], [0, 0, 1, 1], [], []>} : vector<16x128xbf16>, vector<128x64xbf16>, vector<16x64xf32> -> vector<16x64xf32>
    %c0_22 = arith.constant 0 : index
    %c0_23 = arith.constant 0 : index
    %46 = vector.load %arg9[%c0_22, %c0_23] : memref<1x64xf32, #tpu.memory_space<vmem>>, vector<1x64xf32>
    %47 = vector.broadcast %46 : vector<1x64xf32> to vector<16x64xf32>
    %48 = arith.addf %45, %47 : vector<16x64xf32>
    %cst_24 = arith.constant 0.000000e+00 : f32
    %49 = vector.broadcast %cst_24 : f32 to vector<16x64xf32>
    %50 = arith.maximumf %48, %49 : vector<16x64xf32>
    %c0_25 = arith.constant 0 : index
    %c0_26 = arith.constant 0 : index
    %51 = vector.load %arg10[%c0_25, %c0_26] : memref<1x64xf32, #tpu.memory_space<vmem>>, vector<1x64xf32>
    %52 = vector.broadcast %51 : vector<1x64xf32> to vector<16x64xf32>
    %53 = arith.mulf %50, %52 : vector<16x64xf32>
    %cst_27 = arith.constant dense<0.000000e+00> : vector<16xf32>
    %54 = vector.multi_reduction <add>, %53, %cst_27 [1] : vector<16x64xf32> to vector<16xf32>
    %55 = vector.shape_cast %54 : vector<16xf32> to vector<1x16xf32>
    %c0_28 = arith.constant 0 : index
    %c0_29 = arith.constant 0 : index
    %56 = vector.load %arg11[%c0_28, %c0_29] : memref<1x1xf32, #tpu.memory_space<vmem>>, vector<1x1xf32>
    %57 = vector.broadcast %56 : vector<1x1xf32> to vector<1x16xf32>
    %58 = arith.addf %55, %57 : vector<1x16xf32>
    %c0_30 = arith.constant 0 : index
    %c0_31 = arith.constant 0 : index
    %59 = vector.load %arg12[%c0_30, %c0_31] : memref<1x16xf32, #tpu.memory_space<vmem>>, vector<1x16xf32>
    tpu.vector_store %arg12[%c0_30, %c0_31], %58 {strides = array<i32>} : memref<1x16xf32, #tpu.memory_space<vmem>>, vector<1x16xf32>,
    return
  }
  func.func @transform_0(%arg0: i32) -> (i32, i32) {
    %c0_i32 = arith.constant 0 : i32
    %c0_i32_0 = arith.constant 0 : i32
    return %arg0, %c0_i32 : i32, i32
  }
  func.func @transform_1(%arg0: i32) -> (i32, i32) {
    %c0_i32 = arith.constant 0 : i32
    %c0_i32_0 = arith.constant 0 : i32
    return %arg0, %c0_i32 : i32, i32
  }
  func.func @transform_2(%arg0: i32) -> (i32, i32) {
    %c0_i32 = arith.constant 0 : i32
    %c0_i32_0 = arith.constant 0 : i32
    %c0_i32_1 = arith.constant 0 : i32
    return %c0_i32, %c0_i32_0 : i32, i32
  }
  func.func @transform_3(%arg0: i32) -> (i32, i32) {
    %c0_i32 = arith.constant 0 : i32
    %c0_i32_0 = arith.constant 0 : i32
    %c0_i32_1 = arith.constant 0 : i32
    return %c0_i32, %c0_i32_0 : i32, i32
  }
  func.func @transform_4(%arg0: i32) -> (i32, i32) {
    %c0_i32 = arith.constant 0 : i32
    %c0_i32_0 = arith.constant 0 : i32
    %c0_i32_1 = arith.constant 0 : i32
    return %c0_i32, %c0_i32_0 : i32, i32
  }
  func.func @transform_5(%arg0: i32) -> (i32, i32) {
    %c0_i32 = arith.constant 0 : i32
    %c0_i32_0 = arith.constant 0 : i32
    %c0_i32_1 = arith.constant 0 : i32
    return %c0_i32, %c0_i32_0 : i32, i32
  }
  func.func @transform_6(%arg0: i32) -> (i32, i32) {
    %c0_i32 = arith.constant 0 : i32
    %c0_i32_0 = arith.constant 0 : i32
    %c0_i32_1 = arith.constant 0 : i32
    return %c0_i32, %c0_i32_0 : i32, i32
  }
  func.func @transform_7(%arg0: i32) -> (i32, i32) {
    %c0_i32 = arith.constant 0 : i32
    %c0_i32_0 = arith.constant 0 : i32
    %c0_i32_1 = arith.constant 0 : i32
    return %c0_i32, %c0_i32_0 : i32, i32
  }
  func.func @transform_8(%arg0: i32) -> (i32, i32) {
    %c0_i32 = arith.constant 0 : i32
    %c0_i32_0 = arith.constant 0 : i32
    %c0_i32_1 = arith.constant 0 : i32
    return %c0_i32, %c0_i32_0 : i32, i32
  }
  func.func @transform_9(%arg0: i32) -> (i32, i32) {
    %c0_i32 = arith.constant 0 : i32
    %c0_i32_0 = arith.constant 0 : i32
    %c0_i32_1 = arith.constant 0 : i32
    return %c0_i32, %c0_i32_0 : i32, i32
  }
  func.func @transform_10(%arg0: i32) -> (i32, i32) {
    %c0_i32 = arith.constant 0 : i32
    %c0_i32_0 = arith.constant 0 : i32
    %c0_i32_1 = arith.constant 0 : i32
    return %c0_i32, %c0_i32_0 : i32, i32
  }
  func.func @transform_11(%arg0: i32) -> (i32, i32) {
    %c0_i32 = arith.constant 0 : i32
    %c0_i32_0 = arith.constant 0 : i32
    return %arg0, %c0_i32 : i32, i32
  }
}

</mosaic_0001>

<llo_original>
// kernel: tpu_custom_call.1
$region0: #{tpu_custom_call.1}
  #allocation0 [shape = 'u32[]', space=smem, size = 0x4, offset = 0x4, fixed_abs, tag = 'smem constant byte address 0x4 - core index']
  #allocation1 [shape = 'u32[144,128]{1,0:T(1,128)}', space=vmem, size = 0x12000, scoped, tag = 'internal scratch']
  #allocation2 [shape = 'f32[1,1]{1,0:T(1,128)S(1)}', space=vmem, size = 0x200, scoped, tag = 'scoped memory for tpu_custom_call.1']
  %s0 = inlined_call_operand.vmem [shape: f32[16,8], index: 0, kind: input, shape index: {}]
  %s1 = inlined_call_operand.vmem [shape: s32[16,2], index: 1, kind: input, shape index: {}]
  %s2 = inlined_call_operand.hbm [shape: bf16[8,256], index: 2, kind: input, shape index: {}]
  %s3 = inlined_call_operand.hbm [shape: f32[15,256], index: 3, kind: input, shape index: {}]
  %s4 = inlined_call_operand.vmem [shape: f32[1,256], index: 4, kind: input, shape index: {}]
  %s5 = inlined_call_operand.vmem [shape: bf16[256,128], index: 5, kind: input, shape index: {}]
  %s6 = inlined_call_operand.vmem [shape: f32[1,128], index: 6, kind: input, shape index: {}]
  %s7 = inlined_call_operand.vmem [shape: bf16[128,64], index: 7, kind: input, shape index: {}]
  %s8 = inlined_call_operand.vmem [shape: f32[1,64], index: 8, kind: input, shape index: {}]
  %s9 = inlined_call_operand.vmem [shape: f32[1,64], index: 9, kind: input, shape index: {}]
  %s10 = inlined_call_operand.<no memory space> [shape: f32[1,1], index: 10, kind: input, shape index: {}]
  %s11 = inlined_call_operand.hbm [shape: f32[1,16], index: 11, kind: output, shape index: {}]
  %s12 = sld [smem:[#allocation0]]
  $region62: #{tpu_custom_call.1} parent=0
    _
  %s14 = ssub.s32 1, %s12
  %s15 = scalar_select 0, %s14, %s12
  %v16 = vstv %s10
  %17 = vst [vmem:[#allocation2] sm:$0x1] %v16
  $region1: #{tpu_custom_call.1} parent=0
    #allocation3 [shape = 'u8[4096]{0}', space=vmem, size = 0x1000, scoped, tag = 'input window, operand 2, single buffered']
    #allocation4 [shape = 's32[1]{0}', space=sflag, size = 0x4, scoped, tag = 'scoped memory for tpu_custom_call.1']
    #allocation5 [shape = 's32[1]{0}', space=sflag, size = 0x4, scoped, tag = 'scoped memory for tpu_custom_call.1']
    #allocation6 [shape = 'u8[16384]{0}', space=vmem, size = 0x4000, scoped, tag = 'input window, operand 3, single buffered']
    #allocation7 [shape = 's32[1]{0}', space=sflag, size = 0x4, scoped, tag = 'scoped memory for tpu_custom_call.1']
    #allocation8 [shape = 'u8[512]{0}', space=vmem, size = 0x400, scoped, tag = 'output window, operand 0, single buffered']
    %18 = vsyncpa [#allocation4], 0
    %19 = vsyncpa [#allocation7], 0
    %20 = vsyncpa [#allocation5], 0
    // Predicated region
    $region2: #{tpu_custom_call.1} parent=1 // pred_check
      _
    $region3: #{tpu_custom_call.1} parent=1 // pred_check_branch
      %22 = sbr.rel (0) target = $region5
    $region4: #{tpu_custom_call.1} parent=1 // pred_region
      _
    $region5: #{tpu_custom_call.1} parent=1 // pred_fallthru
      _
    // Predicated region
    $region6: #{tpu_custom_call.1} parent=1 // pred_check
      _
    $region7: #{tpu_custom_call.1} parent=1 // pred_check_branch
      %24 = sbr.rel (0) target = $region9
    $region8: #{tpu_custom_call.1} parent=1 // pred_region
      _
    $region9: #{tpu_custom_call.1} parent=1 // pred_fallthru
      _
    // Predicated region
    $region10: #{tpu_custom_call.1} parent=1 // pred_check
      _
    $region11: #{tpu_custom_call.1} parent=1 // pred_check_branch
      %26 = sbr.rel (0) target = $region13
    $region12: #{tpu_custom_call.1} parent=1 // pred_region
      %s28 = ssub.s32 128, 128
      %29 = vsyncadd [#allocation4], %s28
      %s31 = sshll.u32 [#allocation3], 4
      %s32 = int_to_ptr.vmem [resolvable:$true] %s31
      %34 = dma.hbm_to_vmem [thread:$0]  %s2, 128, %s32, [#allocation4]
    $region13: #{tpu_custom_call.1} parent=1 // pred_fallthru
      _
    // Predicated region
    $region14: #{tpu_custom_call.1} parent=1 // pred_check
      _
    $region15: #{tpu_custom_call.1} parent=1 // pred_check_branch
      %36 = sbr.rel (0) target = $region17
    $region16: #{tpu_custom_call.1} parent=1 // pred_region
      %s38 = ssub.s32 512, 512
      %39 = vsyncadd [#allocation7], %s38
      %s40 = sshll.u32 [#allocation6], 4
      %s41 = int_to_ptr.vmem [resolvable:$true] %s40
      %46 = dma.hbm_to_vmem [thread:$0]  %s3, 512, %s41, [#allocation7], 256, 256, 16
    $region17: #{tpu_custom_call.1} parent=1 // pred_fallthru
      _
    // Predicated region
    $region18: #{tpu_custom_call.1} parent=1 // pred_check
      _
    $region19: #{tpu_custom_call.1} parent=1 // pred_check_branch
      %48 = sbr.rel (0) target = $region21
    $region20: #{tpu_custom_call.1} parent=1 // pred_region
      _
    $region21: #{tpu_custom_call.1} parent=1 // pred_fallthru
      _
    // Predicated region
    $region22: #{tpu_custom_call.1} parent=1 // pred_check
      _
    $region23: #{tpu_custom_call.1} parent=1 // pred_check_branch
      %50 = sbr.rel (0) target = $region25
    $region24: #{tpu_custom_call.1} parent=1 // pred_region
      _
    $region25: #{tpu_custom_call.1} parent=1 // pred_fallthru
      _
    // Predicated region
    $region26: #{tpu_custom_call.1} parent=1 // pred_check
      _
    $region27: #{tpu_custom_call.1} parent=1 // pred_check_branch
      %52 = sbr.rel (0) target = $region29
    $region28: #{tpu_custom_call.1} parent=1 // pred_region
      _
    $region29: #{tpu_custom_call.1} parent=1 // pred_fallthru
      _
    // Predicated region
    $region30: #{tpu_custom_call.1} parent=1 // pred_check
      _
    $region31: #{tpu_custom_call.1} parent=1 // pred_check_branch
      %54 = sbr.rel (0) target = $region33
    $region32: #{tpu_custom_call.1} parent=1 // pred_region
      _
    $region33: #{tpu_custom_call.1} parent=1 // pred_fallthru
      _
    // Predicated region
    $region34: #{tpu_custom_call.1} parent=1 // pred_check
      _
    $region35: #{tpu_custom_call.1} parent=1 // pred_check_branch
      %56 = sbr.rel (0) target = $region37
    $region36: #{tpu_custom_call.1} parent=1 // pred_region
      _
    $region37: #{tpu_custom_call.1} parent=1 // pred_fallthru
      _
    // Predicated region
    $region38: #{tpu_custom_call.1} parent=1 // pred_check
      _
    $region39: #{tpu_custom_call.1} parent=1 // pred_check_branch
      %58 = sbr.rel (0) target = $region41
    $region40: #{tpu_custom_call.1} parent=1 // pred_region
      _
    $region41: #{tpu_custom_call.1} parent=1 // pred_fallthru
      _
    // Predicated region
    $region42: #{tpu_custom_call.1} parent=1 // pred_check
      _
    $region43: #{tpu_custom_call.1} parent=1 // pred_check_branch
      %60 = sbr.rel (0) target = $region45
    $region44: #{tpu_custom_call.1} parent=1 // pred_region
      _
    $region45: #{tpu_custom_call.1} parent=1 // pred_fallthru
      _
    // Predicated region
    $region46: #{tpu_custom_call.1} parent=1 // pred_check
      _
    $region47: #{tpu_custom_call.1} parent=1 // pred_check_branch
      %62 = sbr.rel (0) target = $region49
    $region48: #{tpu_custom_call.1} parent=1 // pred_region
      %63 = dma.done [#allocation4], 128
    $region49: #{tpu_custom_call.1} parent=1 // pred_fallthru
      _
    // Predicated region
    $region50: #{tpu_custom_call.1} parent=1 // pred_check
      _
    $region51: #{tpu_custom_call.1} parent=1 // pred_check_branch
      %65 = sbr.rel (0) target = $region53
    $region52: #{tpu_custom_call.1} parent=1 // pred_region
      %66 = dma.done [#allocation7], 512
    $region53: #{tpu_custom_call.1} parent=1 // pred_fallthru
      _
    %v68 = vld [vmem:[%s0] sm:$0xff]
    %v69 = vld [vmem:[%s0 + $0x8] sm:$0xff]
    %v70 = vpack.c.bf16 %v69, %v68
    %v71 = vld [vmem:[#allocation3] sm:$0xff]
    %v72 = vld [vmem:[%s1] sm:$0xff]
    %v73 = vld [vmem:[%s1 + $0x8] sm:$0xff]
    %v74 = vlaneseq
    %v75 = vand.u32 %v74, 127
    %vm76 = vcmp.gt.s32.totalorder %v72, 0
    %v77 = vsel %vm76, %v72, 0
    %vm78 = vcmp.gt.s32.totalorder %v73, 0
    %v79 = vsel %vm78, %v73, 0
    %vm80 = vcmp.lt.s32.totalorder %v77, 9
    %v81 = vsel %vm80, %v77, 9
    %vm82 = vcmp.lt.s32.totalorder %v79, 9
    %v83 = vsel %vm82, %v79, 9
    %84 = vset.pattern.permute.xlu0 0
    %85 = vperm.xlu0 %84, %v81
    %v86 = vpop.permute.xlu0 %85
    %87 = vset.pattern.permute.xlu0 0
    %88 = vperm.xlu0 %87, %v83
    %v89 = vpop.permute.xlu0 %88
    %vm90 = vcmp.eq.s32.totalorder %v75, %v86
    %vm91 = vcmp.eq.s32.totalorder %v75, %v89
    %vm92 = vcmp.lt.s32.totalorder %v77, 4
    %v93 = vsel %vm92, %v77, 4
    %vm94 = vcmp.lt.s32.totalorder %v79, 4
    %v95 = vsel %vm94, %v79, 4
    %v96 = vadd.s32 %v93, 10
    %v97 = vadd.s32 %v95, 10
    %98 = vset.pattern.permute.xlu0 1
    %99 = vperm.xlu0 %98, %v96
    %v100 = vpop.permute.xlu0 %99
    %101 = vset.pattern.permute.xlu0 1
    %102 = vperm.xlu0 %101, %v97
    %v103 = vpop.permute.xlu0 %102
    %vm104 = vcmp.eq.s32.totalorder %v75, %v100
    %vm105 = vcmp.eq.s32.totalorder %v75, %v103
    %vm106 = vmor %vm90, %vm104
    %vm107 = vmor %vm91, %vm105
    %v108 = vsel %vm106, 1, 0
    %v109 = vsel %vm107, 1, 0
    %v110 = vcvt.s32.f32 %v108
    %v111 = vcvt.s32.f32 %v109
    %v112 = vld [vmem:[#allocation6] sm:$0xff]
    %v113 = vld [vmem:[#allocation6 + $0x8] sm:$0xff]
    %v114 = vld [vmem:[#allocation6 + $0x10] sm:$0x7f]
    %v115 = vld [vmem:[#allocation6 + $0x18] sm:$0x7f]
    %vm116 = vcmask 121856
    %v118 = vsel %vm116, %v110, 0
    %v121 = vsel %vm116, %v111, 0
    %vm123 = vcmask 1046528
    %v125 = vsel %vm123, %v114, 0
    %v128 = vsel %vm123, %v115, 0
    %130 = vmatprep.subr.mxu0 %v113
    %131 = vmatpush1.msra.mxu0 %v112
    %132 = vmatprep.subr.mxu0 %v128
    %133 = vmatpush1.msra.mxu0 %v125
    %134 = vmatprep.subr.mxu0 0.0
    %135 = vmatpush1.msra.mxu0 0.0
    %136 = vmatprep.subr.mxu0 0.0
    %137 = vmatpush1.msra.mxu0 0.0
    %138 = vmatprep.subr.mxu0 0.0
    %139 = vmatpush1.msra.mxu0 0.0
    %140 = vmatprep.subr.mxu0 0.0
    %141 = vmatpush1.msra.mxu0 0.0
    %142 = vmatprep.subr.mxu0 0.0
    %143 = vmatpush1.msra.mxu0 0.0
    %144 = vmatprep.subr.mxu0 0.0
    %145 = vmatpush1.msra.mxu0 0.0
    %146 = vmatprep.subr.mxu0 0.0
    %147 = vmatpush1.msra.mxu0 0.0
    %148 = vmatprep.subr.mxu0 0.0
    %149 = vmatpush1.msra.mxu0 0.0
    %150 = vmatprep.subr.mxu0 0.0
    %151 = vmatpush1.msra.mxu0 0.0
    %152 = vmatprep.subr.mxu0 0.0
    %153 = vmatpush1.msra.mxu0 0.0
    %154 = vmatprep.subr.mxu0 0.0
    %155 = vmatpush1.msra.mxu0 0.0
    %156 = vmatprep.subr.mxu0 0.0
    %157 = vmatpush1.msra.mxu0 0.0
    %158 = vmatprep.subr.mxu0 0.0
    %159 = vmatpush1.msra.mxu0 0.0
    %160 = vmatprep.subr.mxu0 0.0
    %161 = vmatpush1.msra.mxu0 0.0
    %162 = vmatprep.subr.mxu0 0.0
    %163 = vmatpush1.msra.mxu0 0.0
    %164 = vmatprep.subr.mxu0 0.0
    %165 = vmatpush1.msra.mxu0 0.0
    %166 = vmatprep.subr.mxu0 0.0
    %167 = vmatpush1.msra.mxu0 0.0
    %168 = vmatprep.subr.mxu0 0.0
    %169 = vmatpush1.msra.mxu0 0.0
    %170 = vmatprep.subr.mxu0 0.0
    %171 = vmatpush1.msra.mxu0 0.0
    %172 = vmatprep.subr.mxu0 0.0
    %173 = vmatpush1.msra.mxu0 0.0
    %174 = vmatprep.subr.mxu0 0.0
    %175 = vmatpush1.msra.mxu0 0.0
    %176 = vmatprep.subr.mxu0 0.0
    %177 = vmatpush1.msra.mxu0 0.0
    %178 = vmatprep.subr.mxu0 0.0
    %179 = vmatpush1.msra.mxu0 0.0
    %180 = vmatprep.subr.mxu0 0.0
    %181 = vmatpush1.msra.mxu0 0.0
    %182 = vmatprep.subr.mxu0 0.0
    %183 = vmatpush1.msra.mxu0 0.0
    %184 = vmatprep.subr.mxu0 0.0
    %185 = vmatpush1.msra.mxu0 0.0
    %186 = vmatprep.subr.mxu0 0.0
    %187 = vmatpush1.msra.mxu0 0.0
    %188 = vmatprep.subr.mxu0 0.0
    %189 = vmatpush1.msra.mxu0 0.0
    %190 = vmatprep.subr.mxu0 0.0
    %191 = vmatpush1.msra.mxu0 0.0
    %192 = vmatprep.subr.mxu0 0.0
    %193 = vmatpush1.msra.mxu0 0.0
    %194 = vmatprep.mubr.f32.mxu0 0.0
    %195 = vmatmul.mubr.f32.gmra.mrb[0].mxu0 %v118
    %v196 = vpop.f32.mrb[0].mxu0
    %v197 = vadd.f32 0.0, %v196
    %v198 = vpop.f32.mrb[0].mxu0
    %v199 = vadd.f32 0.0, %v198
    %200 = vmatprep.mubr.f32.mxu0 0.0
    %201 = vmatmul.mubr.f32.gmra.mrb[0].mxu0 %v121
    %v202 = vpop.f32.mrb[0].mxu0
    %v203 = vadd.f32 0.0, %v202
    %v204 = vpop.f32.mrb[0].mxu0
    %v205 = vadd.f32 0.0, %v204
    %206 = vdwg.mxu0
    %v208 = vunpack.c.l.b16 %v71
    %v209 = vunpack.c.h.b16 %v71
    %v210 = vpack.c.b16 %v208, %v208
    %v211 = vpack.c.b16 %v209, %v209
    %vm212 = vcmask 64512
    %v214 = vsel %vm212, %v70, 0
    %vm216 = vcmask 1043456
    %v218 = vsel %vm216, %v210, 0
    %v221 = vsel %vm216, %v211, 0
    %223 = vmatprep.subr.bf16.mxu0 %v221
    %224 = vmatpush1.bf16.msra.mxu0 %v218
    %225 = vmatprep.subr.bf16.mxu0 0
    %226 = vmatpush1.bf16.msra.mxu0 0
    %227 = vmatprep.subr.bf16.mxu0 0
    %228 = vmatpush1.bf16.msra.mxu0 0
    %229 = vmatprep.subr.bf16.mxu0 0
    %230 = vmatpush1.bf16.msra.mxu0 0
    %231 = vmatprep.subr.bf16.mxu0 0
    %232 = vmatpush1.bf16.msra.mxu0 0
    %233 = vmatprep.subr.bf16.mxu0 0
    %234 = vmatpush1.bf16.msra.mxu0 0
    %235 = vmatprep.subr.bf16.mxu0 0
    %236 = vmatpush1.bf16.msra.mxu0 0
    %237 = vmatprep.subr.bf16.mxu0 0
    %238 = vmatpush1.bf16.msra.mxu0 0
    %239 = vmatprep.subr.bf16.mxu0 0
    %240 = vmatpush1.bf16.msra.mxu0 0
    %241 = vmatprep.subr.bf16.mxu0 0
    %242 = vmatpush1.bf16.msra.mxu0 0
    %243 = vmatprep.subr.bf16.mxu0 0
    %244 = vmatpush1.bf16.msra.mxu0 0
    %245 = vmatprep.subr.bf16.mxu0 0
    %246 = vmatpush1.bf16.msra.mxu0 0
    %247 = vmatprep.subr.bf16.mxu0 0
    %248 = vmatpush1.bf16.msra.mxu0 0
    %249 = vmatprep.subr.bf16.mxu0 0
    %250 = vmatpush1.bf16.msra.mxu0 0
    %251 = vmatprep.subr.bf16.mxu0 0
    %252 = vmatpush1.bf16.msra.mxu0 0
    %253 = vmatprep.subr.bf16.mxu0 0
    %254 = vmatpush1.bf16.msra.mxu0 0
    %255 = vmatprep.mubr.bf16.mxu0 0
    %256 = vmatmul.mubr.bf16.gmra.mrb[0].mxu0 %v214
    %v257 = vpop.f32.mrb[0].mxu0
    %v258 = vadd.f32 %v197, %v257
    %v259 = vpop.f32.mrb[0].mxu0
    %v260 = vadd.f32 %v199, %v259
    %v261 = vpop.f32.mrb[0].mxu0
    %v262 = vadd.f32 %v203, %v261
    %v263 = vpop.f32.mrb[0].mxu0
    %v264 = vadd.f32 %v205, %v263
    %265 = vdwg.mxu0
    %v266 = vld [vmem:[%s4] sm:$0x3]
    %v268 = vlaneseq
    %v269 = vshrl.u32 %v268, 7
    %v270 = vsub.s32 0, %v269
    %v271 = vrot.slane %v266, %v270
    %v272 = vlaneseq
    %v273 = vshrl.u32 %v272, 7
    %v274 = vsub.s32 1, %v273
    %v275 = vrot.slane %v266, %v274
    %v278 = vadd.f32 %v258, %v271
    %v279 = vadd.f32 %v260, %v275
    %v280 = vadd.f32 %v262, %v271
    %v281 = vadd.f32 %v264, %v275
    %v282 = vmax.f32 %v278, 0.0
    %v283 = vmax.f32 %v279, 0.0
    %v284 = vmax.f32 %v280, 0.0
    %v285 = vmax.f32 %v281, 0.0
    %v286 = vpack.c.bf16 %v284, %v282
    %v287 = vpack.c.bf16 %v285, %v283
    %v288 = vld [vmem:[%s5] sm:$0xf]
    %v289 = vld [vmem:[%s5 + $0x4] sm:$0xf]
    %v290 = vld [vmem:[%s5 + $0x8] sm:$0xf]
    %v291 = vld [vmem:[%s5 + $0xc] sm:$0xf]
    %v292 = vld [vmem:[%s5 + $0x10] sm:$0xf]
    %v293 = vld [vmem:[%s5 + $0x14] sm:$0xf]
    %v294 = vld [vmem:[%s5 + $0x18] sm:$0xf]
    %v295 = vld [vmem:[%s5 + $0x1c] sm:$0xf]
    %v296 = vld [vmem:[%s5 + $0x20] sm:$0xf]
    %v297 = vld [vmem:[%s5 + $0x24] sm:$0xf]
    %v298 = vld [vmem:[%s5 + $0x28] sm:$0xf]
    %v299 = vld [vmem:[%s5 + $0x2c] sm:$0xf]
    %v300 = vld [vmem:[%s5 + $0x30] sm:$0xf]
    %v301 = vld [vmem:[%s5 + $0x34] sm:$0xf]
    %v302 = vld [vmem:[%s5 + $0x38] sm:$0xf]
    %v303 = vld [vmem:[%s5 + $0x3c] sm:$0xf]
    %v304 = vld [vmem:[%s5 + $0x40] sm:$0xf]
    %v305 = vld [vmem:[%s5 + $0x44] sm:$0xf]
    %v306 = vld [vmem:[%s5 + $0x48] sm:$0xf]
    %v307 = vld [vmem:[%s5 + $0x4c] sm:$0xf]
    %v308 = vld [vmem:[%s5 + $0x50] sm:$0xf]
    %v309 = vld [vmem:[%s5 + $0x54] sm:$0xf]
    %v310 = vld [vmem:[%s5 + $0x58] sm:$0xf]
    %v311 = vld [vmem:[%s5 + $0x5c] sm:$0xf]
    %v312 = vld [vmem:[%s5 + $0x60] sm:$0xf]
    %v313 = vld [vmem:[%s5 + $0x64] sm:$0xf]
    %v314 = vld [vmem:[%s5 + $0x68] sm:$0xf]
    %v315 = vld [vmem:[%s5 + $0x6c] sm:$0xf]
    %v316 = vld [vmem:[%s5 + $0x70] sm:$0xf]
    %v317 = vld [vmem:[%s5 + $0x74] sm:$0xf]
    %v318 = vld [vmem:[%s5 + $0x78] sm:$0xf]
    %v319 = vld [vmem:[%s5 + $0x7c] sm:$0xf]
    %v320 = vld [vmem:[%s6] sm:$0x1]
    %v322 = vlaneseq
    %v323 = vshrl.u32 %v322, 7
    %v324 = vsub.s32 0, %v323
    %v325 = vrot.slane %v320, %v324
    %v359 = vunpack.c.l.b16 %v288
    %v360 = vunpack.c.l.b16 %v289
    %v361 = vunpack.c.l.b16 %v290
    %v362 = vunpack.c.l.b16 %v291
    %v363 = vunpack.c.l.b16 %v292
    %v364 = vunpack.c.l.b16 %v293
    %v365 = vunpack.c.l.b16 %v294
    %v366 = vunpack.c.l.b16 %v295
    %v367 = vunpack.c.l.b16 %v296
    %v368 = vunpack.c.l.b16 %v297
    %v369 = vunpack.c.l.b16 %v298
    %v370 = vunpack.c.l.b16 %v299
    %v371 = vunpack.c.l.b16 %v300
    %v372 = vunpack.c.l.b16 %v301
    %v373 = vunpack.c.l.b16 %v302
    %v374 = vunpack.c.l.b16 %v303
    %v375 = vunpack.c.l.b16 %v304
    %v376 = vunpack.c.l.b16 %v305
    %v377 = vunpack.c.l.b16 %v306
    %v378 = vunpack.c.l.b16 %v307
    %v379 = vunpack.c.l.b16 %v308
    %v380 = vunpack.c.l.b16 %v309
    %v381 = vunpack.c.l.b16 %v310
    %v382 = vunpack.c.l.b16 %v311
    %v383 = vunpack.c.l.b16 %v312
    %v384 = vunpack.c.l.b16 %v313
    %v385 = vunpack.c.l.b16 %v314
    %v386 = vunpack.c.l.b16 %v315
    %v387 = vunpack.c.l.b16 %v316
    %v388 = vunpack.c.l.b16 %v317
    %v389 = vunpack.c.l.b16 %v318
    %v390 = vunpack.c.l.b16 %v319
    %v391 = vpack.c.b16 %v360, %v359
    %v392 = vpack.c.b16 %v362, %v361
    %v393 = vpack.c.b16 %v364, %v363
    %v394 = vpack.c.b16 %v366, %v365
    %v395 = vpack.c.b16 %v368, %v367
    %v396 = vpack.c.b16 %v370, %v369
    %v397 = vpack.c.b16 %v372, %v371
    %v398 = vpack.c.b16 %v374, %v373
    %v399 = vpack.c.b16 %v376, %v375
    %v400 = vpack.c.b16 %v378, %v377
    %v401 = vpack.c.b16 %v380, %v379
    %v402 = vpack.c.b16 %v382, %v381
    %v403 = vpack.c.b16 %v384, %v383
    %v404 = vpack.c.b16 %v386, %v385
    %v405 = vpack.c.b16 %v388, %v387
    %v406 = vpack.c.b16 %v390, %v389
    %423 = vmatprep.subr.bf16.mxu0 0
    %424 = vmatpush1.bf16.msra.mxu0 %v391
    %425 = vmatprep.subr.bf16.mxu0 0
    %426 = vmatpush1.bf16.msra.mxu0 %v392
    %427 = vmatprep.subr.bf16.mxu0 0
    %428 = vmatpush1.bf16.msra.mxu0 %v393
    %429 = vmatprep.subr.bf16.mxu0 0
    %430 = vmatpush1.bf16.msra.mxu0 %v394
    %431 = vmatprep.subr.bf16.mxu0 0
    %432 = vmatpush1.bf16.msra.mxu0 %v395
    %433 = vmatprep.subr.bf16.mxu0 0
    %434 = vmatpush1.bf16.msra.mxu0 %v396
    %435 = vmatprep.subr.bf16.mxu0 0
    %436 = vmatpush1.bf16.msra.mxu0 %v397
    %437 = vmatprep.subr.bf16.mxu0 0
    %438 = vmatpush1.bf16.msra.mxu0 %v398
    %439 = vmatprep.subr.bf16.mxu0 0
    %440 = vmatpush1.bf16.msra.mxu0 %v399
    %441 = vmatprep.subr.bf16.mxu0 0
    %442 = vmatpush1.bf16.msra.mxu0 %v400
    %443 = vmatprep.subr.bf16.mxu0 0
    %444 = vmatpush1.bf16.msra.mxu0 %v401
    %445 = vmatprep.subr.bf16.mxu0 0
    %446 = vmatpush1.bf16.msra.mxu0 %v402
    %447 = vmatprep.subr.bf16.mxu0 0
    %448 = vmatpush1.bf16.msra.mxu0 %v403
    %449 = vmatprep.subr.bf16.mxu0 0
    %450 = vmatpush1.bf16.msra.mxu0 %v404
    %451 = vmatprep.subr.bf16.mxu0 0
    %452 = vmatpush1.bf16.msra.mxu0 %v405
    %453 = vmatprep.subr.bf16.mxu0 0
    %454 = vmatpush1.bf16.msra.mxu0 %v406
    %455 = vmatprep.mubr.bf16.mxu0 %v287
    %456 = vmatmul.mubr.bf16.gmra.mrb[0].mxu0 %v286
    %v457 = vpop.f32.mrb[0].mxu0
    %v458 = vadd.f32 %v325, %v457
    %v459 = vpop.f32.mrb[0].mxu0
    %v460 = vpop.f32.mrb[0].mxu0
    %v461 = vadd.f32 %v325, %v460
    %v462 = vpop.f32.mrb[0].mxu0
    %463 = vdwg.mxu0
    %v464 = vmax.f32 %v458, 0.0
    %v465 = vmax.f32 %v461, 0.0
    %v466 = vpack.c.bf16 %v465, %v464
    %v467 = vld [vmem:[%s7] sm:$0xf]
    %v468 = vld [vmem:[%s7 + $0x4] sm:$0xf]
    %v469 = vld [vmem:[%s7 + $0x8] sm:$0xf]
    %v470 = vld [vmem:[%s7 + $0xc] sm:$0xf]
    %v471 = vld [vmem:[%s7 + $0x10] sm:$0xf]
    %v472 = vld [vmem:[%s7 + $0x14] sm:$0xf]
    %v473 = vld [vmem:[%s7 + $0x18] sm:$0xf]
    %v474 = vld [vmem:[%s7 + $0x1c] sm:$0xf]
    %v475 = vld [vmem:[%s7 + $0x20] sm:$0xf]
    %v476 = vld [vmem:[%s7 + $0x24] sm:$0xf]
    %v477 = vld [vmem:[%s7 + $0x28] sm:$0xf]
    %v478 = vld [vmem:[%s7 + $0x2c] sm:$0xf]
    %v479 = vld [vmem:[%s7 + $0x30] sm:$0xf]
    %v480 = vld [vmem:[%s7 + $0x34] sm:$0xf]
    %v481 = vld [vmem:[%s7 + $0x38] sm:$0xf]
    %v482 = vld [vmem:[%s7 + $0x3c] sm:$0xf]
    %v483 = vld [vmem:[%s8] sm:$0x1]
    %v485 = vlaneseq
    %v486 = vshrl.u32 %v485, 7
    %v487 = vsub.s32 0, %v486
    %v488 = vrot.slane %v483, %v487
    %v506 = vunpack.c.l.b16 %v467
    %v507 = vunpack.c.l.b16 %v468
    %v508 = vunpack.c.l.b16 %v469
    %v509 = vunpack.c.l.b16 %v470
    %v510 = vunpack.c.l.b16 %v471
    %v511 = vunpack.c.l.b16 %v472
    %v512 = vunpack.c.l.b16 %v473
    %v513 = vunpack.c.l.b16 %v474
    %v514 = vunpack.c.l.b16 %v475
    %v515 = vunpack.c.l.b16 %v476
    %v516 = vunpack.c.l.b16 %v477
    %v517 = vunpack.c.l.b16 %v478
    %v518 = vunpack.c.l.b16 %v479
    %v519 = vunpack.c.l.b16 %v480
    %v520 = vunpack.c.l.b16 %v481
    %v521 = vunpack.c.l.b16 %v482
    %v522 = vpack.c.b16 %v507, %v506
    %v523 = vpack.c.b16 %v509, %v508
    %v524 = vpack.c.b16 %v511, %v510
    %v525 = vpack.c.b16 %v513, %v512
    %v526 = vpack.c.b16 %v515, %v514
    %v527 = vpack.c.b16 %v517, %v516
    %v528 = vpack.c.b16 %v519, %v518
    %v529 = vpack.c.b16 %v521, %v520
    %538 = vmatprep.subr.bf16.mxu0 0
    %539 = vmatpush1.bf16.msra.mxu0 %v522
    %540 = vmatprep.subr.bf16.mxu0 0
    %541 = vmatpush1.bf16.msra.mxu0 %v523
    %542 = vmatprep.subr.bf16.mxu0 0
    %543 = vmatpush1.bf16.msra.mxu0 %v524
    %544 = vmatprep.subr.bf16.mxu0 0
    %545 = vmatpush1.bf16.msra.mxu0 %v525
    %546 = vmatprep.subr.bf16.mxu0 0
    %547 = vmatpush1.bf16.msra.mxu0 %v526
    %548 = vmatprep.subr.bf16.mxu0 0
    %549 = vmatpush1.bf16.msra.mxu0 %v527
    %550 = vmatprep.subr.bf16.mxu0 0
    %551 = vmatpush1.bf16.msra.mxu0 %v528
    %552 = vmatprep.subr.bf16.mxu0 0
    %553 = vmatpush1.bf16.msra.mxu0 %v529
    %554 = vmatprep.subr.bf16.mxu0 0
    %555 = vmatpush1.bf16.msra.mxu0 0
    %556 = vmatprep.subr.bf16.mxu0 0
    %557 = vmatpush1.bf16.msra.mxu0 0
    %558 = vmatprep.subr.bf16.mxu0 0
    %559 = vmatpush1.bf16.msra.mxu0 0
    %560 = vmatprep.subr.bf16.mxu0 0
    %561 = vmatpush1.bf16.msra.mxu0 0
    %562 = vmatprep.subr.bf16.mxu0 0
    %563 = vmatpush1.bf16.msra.mxu0 0
    %564 = vmatprep.subr.bf16.mxu0 0
    %565 = vmatpush1.bf16.msra.mxu0 0
    %566 = vmatprep.subr.bf16.mxu0 0
    %567 = vmatpush1.bf16.msra.mxu0 0
    %568 = vmatprep.subr.bf16.mxu0 0
    %569 = vmatpush1.bf16.msra.mxu0 0
    %570 = vmatprep.mubr.bf16.mxu0 0
    %571 = vmatmul.mubr.bf16.gmra.mrb[0].mxu0 %v466
    %v572 = vpop.f32.mrb[0].mxu0
    %v573 = vadd.f32 %v488, %v572
    %v574 = vpop.f32.mrb[0].mxu0
    %v575 = vpop.f32.mrb[0].mxu0
    %v576 = vadd.f32 %v488, %v575
    %v577 = vpop.f32.mrb[0].mxu0
    %578 = vdwg.mxu0
    %v579 = vmax.f32 %v573, 0.0
    %v580 = vmax.f32 %v576, 0.0
    %v581 = vld [vmem:[%s9] sm:$0x1]
    %v583 = vlaneseq
    %v584 = vshrl.u32 %v583, 7
    %v585 = vsub.s32 0, %v584
    %v586 = vrot.slane %v581, %v585
    %v588 = vmul.f32 %v579, %v586
    %v589 = vmul.f32 %v580, %v586
    %vm590 = vcmask 523264
    %v591 = vsel %vm590, %v588, 0.0
    %592 = vadd.xlane.f32.xlu0 %v591
    %v593 = vpop.xlane.xlu0 %592
    %v594 = vsel %vm590, %v589, 0.0
    %595 = vadd.xlane.f32.xlu0 %v594
    %v596 = vpop.xlane.xlu0 %595
    %v597 = vld [vmem:[#allocation2] sm:$0x1]
    %599 = vset.pattern.permute.xlu0 0
    %600 = vperm.xlu0 %599, %v597
    %v601 = vpop.permute.xlu0 %600
    %v603 = vlaneseq
    %v604 = vshrl.u32 %v603, 7
    %v605 = vsub.s32 0, %v604
    %v606 = vrot.slane %v601, %v605
    %v607 = vadd.f32 %v593, %v606
    %v608 = vadd.f32 %v596, %v606
    %v611 = vlaneseq
    %v612 = vshrl.u32 %v611, 7
    %v613 = vsub.s32 %v75, %v612
    %v614 = vrot.slane %v607, %v613
    %v615 = vadd.s32 %v75, 4294967288
    %v616 = vlaneseq
    %v617 = vshrl.u32 %v616, 7
    %v618 = vsub.s32 %v615, %v617
    %v619 = vrot.slane %v608, %v618
    %vm620 = vcmask 130112
    %v621 = vsel %vm620, %v619, %v614
    %vm623 = vcmask 122880
    %624 = vst.msk [vmem:[#allocation8] sm:$0x1] %vm623, %v621
    // Predicated region
    $region54: #{tpu_custom_call.1} parent=1 // pred_check
      _
    $region55: #{tpu_custom_call.1} parent=1 // pred_check_branch
      %626 = sbr.rel (0) target = $region57
    $region56: #{tpu_custom_call.1} parent=1 // pred_region
      %s628 = ssub.s32 16, 16
      %629 = vsyncadd [#allocation5], %s628
      %s631 = sshll.u32 [#allocation8], 4
      %s632 = int_to_ptr.vmem [resolvable:$true] %s631
      %634 = dma.vmem_to_hbm [thread:$0]  %s632, 16, %s11, [#allocation5]
    $region57: #{tpu_custom_call.1} parent=1 // pred_fallthru
      _
    // Predicated region
    $region58: #{tpu_custom_call.1} parent=1 // pred_check
      _
    $region59: #{tpu_custom_call.1} parent=1 // pred_check_branch
      %636 = sbr.rel (0) target = $region61
    $region60: #{tpu_custom_call.1} parent=1 // pred_region
      %637 = dma.done [#allocation5], 16
    $region61: #{tpu_custom_call.1} parent=1 // pred_fallthru
      _
    %638 = vsyncpa [#allocation4], 1
    %639 = vsyncpa [#allocation7], 1
    %640 = vsyncpa [#allocation5], 1

</llo_original>
